<compile_context>
chip_gen: v7x
topology: tpu7x:2x2x1
jax: 0.10.0
libtpu: 0.0.40
codegen_flags: <defaults>
</compile_context>

<pallas_src>
import functools

import jax
import jax.numpy as jnp
from jax.experimental import pallas as pl
from jax.experimental.pallas import tpu as pltpu

ALPHA = 0.25
GAMMA = 2.0
LANES = 128
TARGET_BLOCK_ROWS = 1024  # (1024,128) f32 tile = 512 KiB; 2 inputs x 2 bufs
                          # + accumulator ~ 2.5 MiB VMEM -> fine on all gens.


def _focal_elementwise(p, t, alpha, gamma, hard_targets):
    """Per-element focal loss (same math as the PyTorch module)."""
    p = p.astype(jnp.float32)
    t = t.astype(jnp.float32)
    if hard_targets:
        # Exact only for t in {0,1}: pt on the VPU, a single clamped log.
        pt = t * p + (1.0 - t) * (1.0 - p)
        bce = -jnp.maximum(jnp.log(pt), -100.0)
    else:
        # General (soft-target) path; F.binary_cross_entropy clamps each log
        # term at -100.
        log_p = jnp.maximum(jnp.log(p), -100.0)
        log_1mp = jnp.maximum(jnp.log(1.0 - p), -100.0)
        bce = -(t * log_p + (1.0 - t) * log_1mp)
        pt = jnp.exp(-bce)
    one_minus_pt = 1.0 - pt
    if gamma == 2:                                  # default: explicit square
        mod = one_minus_pt * one_minus_pt
    elif float(gamma) == int(gamma) and gamma >= 0:
        mod = one_minus_pt ** int(gamma)            # integer pow -> multiplies
    else:
        mod = one_minus_pt ** gamma                 # float pow as last resort
    return alpha * mod * bce


def _focal_loss_kernel(p_ref, t_ref, out_ref, acc_ref, *, alpha, gamma,
                       hard_targets):
    """Accumulates focal loss over the sequential grid axis; one partial sum
    per entry of the leading (parallel) axis."""
    i = pl.program_id(1)

    @pl.when(i == 0)
    def _():
        acc_ref[...] = jnp.zeros_like(acc_ref)

    acc_ref[...] += _focal_elementwise(p_ref[...], t_ref[...],
                                       alpha, gamma, hard_targets)

    @pl.when(i == pl.num_programs(1) - 1)
    def _():
        out_ref[...] = jnp.broadcast_to(
            jnp.sum(acc_ref[...]), out_ref.shape).astype(jnp.float32)


def focal_loss(inputs, targets, alpha=ALPHA, gamma=GAMMA, hard_targets=False):
    """Mean focal loss over all elements (matches the PyTorch module)."""
    assert inputs.shape == targets.shape
    n = inputs.size

    flat_p = inputs.reshape(-1)
    flat_t = targets.reshape(-1)

    rows_full = n // LANES
    if rows_full >= TARGET_BLOCK_ROWS:
        block_rows = TARGET_BLOCK_ROWS
    else:
        block_rows = (rows_full // 8) * 8   # largest vreg-aligned block

    total = jnp.float32(0.0)
    rows_used = 0
    if block_rows > 0:
        total_blocks = rows_full // block_rows
        nsplit = 2 if total_blocks >= 2 else 1   # 2 partial sums -> both v7x TCs
        blocks_per_split = total_blocks // nsplit
        rows_used = nsplit * blocks_per_split * block_rows

        # Free reshape for contiguous inputs; the slice is a no-op whenever
        # n is a multiple of 128 (the common case).
        p2 = flat_p[: rows_full * LANES].reshape(rows_full, LANES)
        t2 = flat_t[: rows_full * LANES].reshape(rows_full, LANES)

        def in_index(c, i):
            return (c * blocks_per_split + i, 0)

        in_spec = pl.BlockSpec((block_rows, LANES), in_index)

        partials = pl.pallas_call(
            functools.partial(_focal_loss_kernel, alpha=alpha, gamma=gamma,
                              hard_targets=hard_targets),
            out_shape=jax.ShapeDtypeStruct((nsplit, 8, LANES), jnp.float32),
            grid_spec=pltpu.PrefetchScalarGridSpec(
                num_scalar_prefetch=0,
                grid=(nsplit, blocks_per_split),
                in_specs=[in_spec, in_spec],
                out_specs=pl.BlockSpec((1, 8, LANES), lambda c, i: (c, 0, 0)),
                scratch_shapes=[pltpu.VMEM((block_rows, LANES), jnp.float32)],
            ),
            compiler_params=pltpu.CompilerParams(
                dimension_semantics=("parallel", "arbitrary")),
        )(p2, t2)
        total = jnp.sum(partials[:, 0, 0])

    if rows_used * LANES < n:
        # Ragged tail (sub-block rows + sub-row remainder) reduced in plain
        # JAX; it is at most ~2 blocks' worth of elements. Inputs smaller
        # than 8*128 elements also take this path entirely.
        tail_p = flat_p[rows_used * LANES:]
        tail_t = flat_t[rows_used * LANES:]
        total = total + jnp.sum(
            _focal_elementwise(tail_p, tail_t, alpha, gamma, hard_targets))

    return total / jnp.float32(n)


def _focal_loss_ref(inputs, targets, alpha=ALPHA, gamma=GAMMA):
    return jnp.mean(_focal_elementwise(inputs, targets, alpha, gamma, False))


if __name__ == "__main__":
    key = jax.random.PRNGKey(0)
    k1, k2 = jax.random.split(key)

    # NCHW, like the PyTorch segmentation use case.
    shape = (2, 4, 16, 16)
    inputs = jax.nn.sigmoid(jax.random.normal(k1, shape, jnp.float32))   # probs in (0,1)
    targets = (jax.random.uniform(k2, shape) > 0.5).astype(jnp.float32)  # binary targets

    loss = focal_loss(inputs, targets)
    jax.block_until_ready(loss)

    ref = _focal_loss_ref(inputs, targets)
    assert jnp.allclose(loss, ref, rtol=1e-5, atol=1e-6), (loss, ref)

    print("KERNEL_OK")
</pallas_src>

<mosaic_0001>
module attributes {stable_mosaic.version = 11 : i64} {
  func.func @_focal_loss_kernel(%arg0: i32, %arg1: i32, %arg2: memref<16x128xf32, #tpu.memory_space<vmem>>, %arg3: memref<16x128xf32, #tpu.memory_space<vmem>>, %arg4: memref<1x8x128xf32, #tpu.memory_space<vmem>>, %arg5: memref<16x128xf32, #tpu.memory_space<vmem>>) attributes {dimension_semantics = [#tpu.dimension_semantics<parallel>, #tpu.dimension_semantics<arbitrary>], iteration_bounds = array<i64: 1, 1>, scalar_prefetch = 0 : i64, scratch_operands = 1 : i64, tpu.core_type = #tpu.core_type<tc>, window_params = [{transform_indices = @transform_0, window_bounds = array<i64: 16, 128>}, {transform_indices = @transform_1, window_bounds = array<i64: 16, 128>}, {transform_indices = @transform_2, window_bounds = array<i64: 1, 8, 128>}]} {
    %c0_i32 = arith.constant 0 : i32
    %0 = arith.cmpi eq, %arg1, %c0_i32 : i32
    %1 = arith.extui %0 : i1 to i32
    %c0_i32_0 = arith.constant 0 : i32
    %2 = arith.cmpi ne, %1, %c0_i32_0 : i32
    scf.if %2 {
      %cst_17 = arith.constant 0.000000e+00 : f32
      %35 = vector.broadcast %cst_17 : f32 to vector<16x128xf32>
      %c0_18 = arith.constant 0 : index
      %c0_19 = arith.constant 0 : index
      %36 = vector.load %arg5[%c0_18, %c0_19] : memref<16x128xf32, #tpu.memory_space<vmem>>, vector<16x128xf32>
      tpu.vector_store %arg5[%c0_18, %c0_19], %35 {strides = array<i32>} : memref<16x128xf32, #tpu.memory_space<vmem>>, vector<16x128xf32>,
    } else {
    }
    %c0 = arith.constant 0 : index
    %c0_1 = arith.constant 0 : index
    %3 = vector.load %arg5[%c0, %c0_1] : memref<16x128xf32, #tpu.memory_space<vmem>>, vector<16x128xf32>
    %c0_2 = arith.constant 0 : index
    %c0_3 = arith.constant 0 : index
    %4 = vector.load %arg2[%c0_2, %c0_3] : memref<16x128xf32, #tpu.memory_space<vmem>>, vector<16x128xf32>
    %c0_4 = arith.constant 0 : index
    %c0_5 = arith.constant 0 : index
    %5 = vector.load %arg3[%c0_4, %c0_5] : memref<16x128xf32, #tpu.memory_space<vmem>>, vector<16x128xf32>
    %6 = math.log %4 : vector<16x128xf32>
    %cst = arith.constant -1.000000e+02 : f32
    %7 = vector.broadcast %cst : f32 to vector<16x128xf32>
    %8 = arith.maximumf %6, %7 : vector<16x128xf32>
    %cst_6 = arith.constant 1.000000e+00 : f32
    %9 = vector.broadcast %cst_6 : f32 to vector<16x128xf32>
    %10 = arith.subf %9, %4 : vector<16x128xf32>
    %11 = math.log %10 : vector<16x128xf32>
    %cst_7 = arith.constant -1.000000e+02 : f32
    %12 = vector.broadcast %cst_7 : f32 to vector<16x128xf32>
    %13 = arith.maximumf %11, %12 : vector<16x128xf32>
    %14 = arith.mulf %5, %8 : vector<16x128xf32>
    %cst_8 = arith.constant 1.000000e+00 : f32
    %15 = vector.broadcast %cst_8 : f32 to vector<16x128xf32>
    %16 = arith.subf %15, %5 : vector<16x128xf32>
    %17 = arith.mulf %16, %13 : vector<16x128xf32>
    %18 = arith.addf %14, %17 : vector<16x128xf32>
    %cst_9 = arith.constant 0.000000e+00 : f32
    %19 = vector.broadcast %cst_9 : f32 to vector<16x128xf32>
    %20 = arith.subf %19, %18 : vector<16x128xf32>
    %cst_10 = arith.constant 0.000000e+00 : f32
    %21 = vector.broadcast %cst_10 : f32 to vector<16x128xf32>
    %22 = arith.subf %21, %20 : vector<16x128xf32>
    %23 = math.exp %22 : vector<16x128xf32>
    %cst_11 = arith.constant 1.000000e+00 : f32
    %24 = vector.broadcast %cst_11 : f32 to vector<16x128xf32>
    %25 = arith.subf %24, %23 : vector<16x128xf32>
    %26 = arith.mulf %25, %25 : vector<16x128xf32>
    %cst_12 = arith.constant 2.500000e-01 : f32
    %27 = vector.broadcast %cst_12 : f32 to vector<16x128xf32>
    %28 = arith.mulf %27, %26 : vector<16x128xf32>
    %29 = arith.mulf %28, %20 : vector<16x128xf32>
    %30 = arith.addf %3, %29 : vector<16x128xf32>
    %c0_13 = arith.constant 0 : index
    %c0_14 = arith.constant 0 : index
    %31 = vector.load %arg5[%c0_13, %c0_14] : memref<16x128xf32, #tpu.memory_space<vmem>>, vector<16x128xf32>
    tpu.vector_store %arg5[%c0_13, %c0_14], %30 {strides = array<i32>} : memref<16x128xf32, #tpu.memory_space<vmem>>, vector<16x128xf32>,
    %c0_i32_15 = arith.constant 0 : i32
    %32 = arith.cmpi eq, %arg1, %c0_i32_15 : i32
    %33 = arith.extui %32 : i1 to i32
    %c0_i32_16 = arith.constant 0 : i32
    %34 = arith.cmpi ne, %33, %c0_i32_16 : i32
    scf.if %34 {
      %c0_17 = arith.constant 0 : index
      %c0_18 = arith.constant 0 : index
      %35 = vector.load %arg5[%c0_17, %c0_18] : memref<16x128xf32, #tpu.memory_space<vmem>>, vector<16x128xf32>
      %36 = vector.shape_cast %35 : vector<16x128xf32> to vector<1x16x128xf32>
      %cst_19 = arith.constant dense<0.000000e+00> : vector<1xf32>
      %37 = vector.multi_reduction <add>, %36, %cst_19 [1, 2] : vector<1x16x128xf32> to vector<1xf32>
      %38 = vector.shape_cast %37 : vector<1xf32> to vector<1x1x1xf32>
      %39 = vector.extract %38[0, 0, 0] : f32 from vector<1x1x1xf32>
      %40 = vector.broadcast %39 : f32 to vector<1x8x128xf32>
      %c0_20 = arith.constant 0 : index
      %c0_21 = arith.constant 0 : index
      %c0_22 = arith.constant 0 : index
      %41 = vector.load %arg4[%c0_20, %c0_21, %c0_22] : memref<1x8x128xf32, #tpu.memory_space<vmem>>, vector<1x8x128xf32>
      tpu.vector_store %arg4[%c0_20, %c0_21, %c0_22], %40 {strides = array<i32>} : memref<1x8x128xf32, #tpu.memory_space<vmem>>, vector<1x8x128xf32>,
    } else {
    }
    return
  }
  func.func @transform_0(%arg0: i32, %arg1: i32) -> (i32, i32) {
    %c1_i32 = arith.constant 1 : i32
    %0 = arith.muli %arg0, %c1_i32 : i32
    %1 = arith.addi %0, %arg1 : i32
    %c0_i32 = arith.constant 0 : i32
    %c0_i32_0 = arith.constant 0 : i32
    return %1, %c0_i32 : i32, i32
  }
  func.func @transform_1(%arg0: i32, %arg1: i32) -> (i32, i32) {
    %c1_i32 = arith.constant 1 : i32
    %0 = arith.muli %arg0, %c1_i32 : i32
    %1 = arith.addi %0, %arg1 : i32
    %c0_i32 = arith.constant 0 : i32
    %c0_i32_0 = arith.constant 0 : i32
    return %1, %c0_i32 : i32, i32
  }
  func.func @transform_2(%arg0: i32, %arg1: i32) -> (i32, i32, i32) {
    %c0_i32 = arith.constant 0 : i32
    %c0_i32_0 = arith.constant 0 : i32
    %c0_i32_1 = arith.constant 0 : i32
    return %arg0, %c0_i32, %c0_i32_0 : i32, i32, i32
  }
}

</mosaic_0001>

<llo_original>
// kernel: tpu_custom_call.1
$region0: #{tpu_custom_call.1}
  #allocation0 [shape = 'u32[]', space=smem, size = 0x4, offset = 0x4, fixed_abs, tag = 'smem constant byte address 0x4 - core index']
  #allocation1 [shape = 'u32[144,128]{1,0:T(1,128)}', space=vmem, size = 0x12000, scoped, tag = 'internal scratch']
  #allocation2 [shape = 'f32[16,128]{1,0:T(8,128)}', space=vmem, size = 0x2000, scoped, tag = 'scratch operand']
  %s0 = inlined_call_operand.hbm [shape: f32[16,128], index: 0, kind: input, shape index: {}]
  %s1 = inlined_call_operand.hbm [shape: f32[16,128], index: 1, kind: input, shape index: {}]
  %s2 = inlined_call_operand.hbm [shape: f32[1,8,128], index: 2, kind: output, shape index: {}]
  %s3 = sld [smem:[#allocation0]]
  $region34: #{tpu_custom_call.1} parent=0
    _
  %s5 = ssub.s32 1, %s3
  %s6 = scalar_select 0, %s5, %s3
  $region1: #{tpu_custom_call.1} parent=0
    #allocation3 [shape = 'u8[8192]{0}', space=vmem, size = 0x2000, scoped, tag = 'input window, operand 0, single buffered']
    #allocation4 [shape = 's32[1]{0}', space=sflag, size = 0x4, scoped, tag = 'scoped memory for tpu_custom_call.1']
    #allocation5 [shape = 's32[1]{0}', space=sflag, size = 0x4, scoped, tag = 'scoped memory for tpu_custom_call.1']
    #allocation6 [shape = 'u8[8192]{0}', space=vmem, size = 0x2000, scoped, tag = 'input window, operand 1, single buffered']
    #allocation7 [shape = 's32[1]{0}', space=sflag, size = 0x4, scoped, tag = 'scoped memory for tpu_custom_call.1']
    #allocation8 [shape = 'u8[4096]{0}', space=vmem, size = 0x1000, scoped, tag = 'output window, operand 0, single buffered']
    %7 = vsyncpa [#allocation4], 0
    %8 = vsyncpa [#allocation7], 0
    %9 = vsyncpa [#allocation5], 0
    // Predicated region
    $region2: #{tpu_custom_call.1} parent=1 // pred_check
      _
    $region3: #{tpu_custom_call.1} parent=1 // pred_check_branch
      %11 = sbr.rel (0) target = $region5
    $region4: #{tpu_custom_call.1} parent=1 // pred_region
      %s12 = sadd.s32 0, 0
      %s13 = smul.u32 2, %s12
      %s15 = ssub.s32 256, 256
      %16 = vsyncadd [#allocation4], %s15
      %s17 = smul.addr %s13, 128
      %s18 = scalar_lea.hbm %s0, %s17
      %s19 = sshll.u32 [#allocation3], 4
      %s20 = int_to_ptr.vmem [resolvable:$true] %s19
      %25 = dma.hbm_to_vmem [thread:$0]  %s18, 256, %s20, [#allocation4], 128, 128, 8
    $region5: #{tpu_custom_call.1} parent=1 // pred_fallthru
      _
    // Predicated region
    $region6: #{tpu_custom_call.1} parent=1 // pred_check
      _
    $region7: #{tpu_custom_call.1} parent=1 // pred_check_branch
      %27 = sbr.rel (0) target = $region9
    $region8: #{tpu_custom_call.1} parent=1 // pred_region
      %s28 = sadd.s32 0, 0
      %s29 = smul.u32 2, %s28
      %s31 = ssub.s32 256, 256
      %32 = vsyncadd [#allocation7], %s31
      %s33 = smul.addr %s29, 128
      %s34 = scalar_lea.hbm %s1, %s33
      %s35 = sshll.u32 [#allocation6], 4
      %s36 = int_to_ptr.vmem [resolvable:$true] %s35
      %41 = dma.hbm_to_vmem [thread:$0]  %s34, 256, %s36, [#allocation7], 128, 128, 8
    $region9: #{tpu_custom_call.1} parent=1 // pred_fallthru
      _
    // Predicated region
    $region10: #{tpu_custom_call.1} parent=1 // pred_check
      _
    $region11: #{tpu_custom_call.1} parent=1 // pred_check_branch
      %43 = sbr.rel (0) target = $region13
    $region12: #{tpu_custom_call.1} parent=1 // pred_region
      %44 = dma.done [#allocation4], 256
    $region13: #{tpu_custom_call.1} parent=1 // pred_fallthru
      _
    // Predicated region
    $region14: #{tpu_custom_call.1} parent=1 // pred_check
      _
    $region15: #{tpu_custom_call.1} parent=1 // pred_check_branch
      %46 = sbr.rel (0) target = $region17
    $region16: #{tpu_custom_call.1} parent=1 // pred_region
      %47 = dma.done [#allocation7], 256
    $region17: #{tpu_custom_call.1} parent=1 // pred_fallthru
      _
    %s48 = sadd.s32 0, 0
    %s49 = smul.u32 2, %s48
    %s50 = sadd.s32 0, 0
    %s51 = smul.u32 2, %s50
    %p52 = scmp.eq.s32.totalorder 0, 0
    // Predicated region
    $region18: #{tpu_custom_call.1} parent=1 // pred_check
      %p53 = pneg %p52
    $region19: #{tpu_custom_call.1} parent=1 // pred_check_branch
      %55 = sbr.rel (%p53) target = $region21
    $region20: #{tpu_custom_call.1} parent=1 // pred_region
      %56 = vst [vmem:[#allocation2] sm:$0xff] 0.0
      %57 = vst [vmem:[#allocation2 + $0x8] sm:$0xff] 0.0
    $region21: #{tpu_custom_call.1} parent=1 // pred_fallthru
      _
    %v58 = vld [vmem:[#allocation2] sm:$0xff]
    %v59 = vld [vmem:[#allocation2 + $0x8] sm:$0xff]
    %v60 = vld [vmem:[#allocation3] sm:$0xff]
    %v61 = vld [vmem:[#allocation3 + $0x8] sm:$0xff]
    %v62 = vld [vmem:[#allocation6] sm:$0xff]
    %v63 = vld [vmem:[#allocation6 + $0x8] sm:$0xff]
    %v64 = vlog2.pop %v60
    %v65 = vmul.f32 %v64, 0.6931472
    %v66 = vlog2.pop %v61
    %v67 = vmul.f32 %v66, 0.6931472
    %v68 = vmax.f32 %v65, -100.0
    %v69 = vmax.f32 %v67, -100.0
    %v70 = vsub.f32 1.0, %v60
    %v71 = vsub.f32 1.0, %v61
    %v72 = vlog2.pop %v70
    %v73 = vmul.f32 %v72, 0.6931472
    %v74 = vlog2.pop %v71
    %v75 = vmul.f32 %v74, 0.6931472
    %v76 = vmax.f32 %v73, -100.0
    %v77 = vmax.f32 %v75, -100.0
    %v78 = vmul.f32 %v62, %v68
    %v79 = vmul.f32 %v63, %v69
    %v80 = vsub.f32 1.0, %v62
    %v81 = vsub.f32 1.0, %v63
    %v82 = vmul.f32 %v80, %v76
    %v83 = vmul.f32 %v81, %v77
    %v84 = vadd.f32 %v78, %v82
    %v85 = vadd.f32 %v79, %v83
    %v86 = vsub.f32 0.0, %v84
    %v87 = vsub.f32 0.0, %v85
    %v88 = vsub.f32 0.0, %v86
    %v89 = vsub.f32 0.0, %v87
    %v90 = vmul.f32 %v88, 1.442695
    %v91 = vpow.pop %v90
    %v92 = vmul.f32 %v89, 1.442695
    %v93 = vpow.pop %v92
    %v94 = vsub.f32 1.0, %v91
    %v95 = vsub.f32 1.0, %v93
    %v96 = vmul.f32 %v94, %v94
    %v97 = vmul.f32 %v95, %v95
    %v98 = vmul.f32 %v96, 0.25
    %v99 = vmul.f32 %v97, 0.25
    %v100 = vmul.f32 %v98, %v86
    %v101 = vmul.f32 %v99, %v87
    %v102 = vadd.f32 %v58, %v100
    %v103 = vadd.f32 %v59, %v101
    %104 = vst [vmem:[#allocation2] sm:$0xff] %v102
    %105 = vst [vmem:[#allocation2 + $0x8] sm:$0xff] %v103
    // Predicated region
    $region22: #{tpu_custom_call.1} parent=1 // pred_check
      %p106 = pneg %p52
    $region23: #{tpu_custom_call.1} parent=1 // pred_check_branch
      %108 = sbr.rel (%p106) target = $region25
    $region24: #{tpu_custom_call.1} parent=1 // pred_region
      %v109 = vld [vmem:[#allocation2] sm:$0xff]
      %v110 = vld [vmem:[#allocation2 + $0x8] sm:$0xff]
      %v111 = vadd.f32 %v109, %v110
      %112 = vadd.xlane.f32.xlu0 %v111
      %v113 = vpop.xlane.xlu0 %112
      %v114 = vrot.slane %v113, 4
      %v115 = vadd.f32 %v113, %v114
      %v116 = vrot.slane %v115, 2
      %v117 = vadd.f32 %v115, %v116
      %v118 = vrot.slane %v117, 1
      %v119 = vadd.f32 %v117, %v118
      %s120 = vtos %v119
      %v121 = vstv %s120
      %122 = vst [vmem:[#allocation8] sm:$0xff] %v121
    $region25: #{tpu_custom_call.1} parent=1 // pred_fallthru
      _
    // Predicated region
    $region26: #{tpu_custom_call.1} parent=1 // pred_check
      _
    $region27: #{tpu_custom_call.1} parent=1 // pred_check_branch
      %124 = sbr.rel (0) target = $region29
    $region28: #{tpu_custom_call.1} parent=1 // pred_region
      %s126 = ssub.s32 128, 128
      %127 = vsyncadd [#allocation5], %s126
      %s129 = sshll.u32 [#allocation8], 4
      %s130 = int_to_ptr.vmem [resolvable:$true] %s129
      %132 = dma.vmem_to_hbm [thread:$0]  %s130, 128, %s2, [#allocation5]
    $region29: #{tpu_custom_call.1} parent=1 // pred_fallthru
      _
    // Predicated region
    $region30: #{tpu_custom_call.1} parent=1 // pred_check
      _
    $region31: #{tpu_custom_call.1} parent=1 // pred_check_branch
      %134 = sbr.rel (0) target = $region33
    $region32: #{tpu_custom_call.1} parent=1 // pred_region
      %135 = dma.done [#allocation5], 128
    $region33: #{tpu_custom_call.1} parent=1 // pred_fallthru
      _
    %136 = vsyncpa [#allocation4], 1
    %137 = vsyncpa [#allocation7], 1
    %138 = vsyncpa [#allocation5], 1

</llo_original>
